<compile_context>
chip_gen: v6e
topology: v6e:2x2x1
jax: 0.10.0
libtpu: 0.0.40
codegen_flags: <defaults>
</compile_context>

<pallas_src>
import jax
import jax.numpy as jnp
from jax.experimental import pallas as pl
from jax.experimental.pallas import tpu as pltpu

P_DROPOUT = 0.2
D_EMBED = 300
D_EMBED_CHAR = 64
D_MODEL = 128
D_IN = D_EMBED + D_EMBED_CHAR          # 364

# Rows per grid step.  At 2048 the per-step footprint is roughly:
#   x tile   f32 (2048, 364) ~3.0 MiB  x2 (double buffered) ~6.0 MiB
#   out tile f32 (2048, 128) ~1.0 MiB  x2                   ~2.0 MiB
#   resident weights/biases                                 ~0.5 MiB
#   f32 in-kernel intermediates (h, gate|transform, blend)  ~6-8 MiB
# => ~17 MiB peak: comfortably under the 32 MiB scoped limit requested below
# and under v7x's 64 MiB physical VMEM.
TILE_M_MAX = 2048
VMEM_LIMIT_BYTES = 32 * 1024 * 1024

# float32 matches the PyTorch reference exactly; flip to jnp.bfloat16 to halve
# the output HBM traffic if the downstream consumer tolerates it.
OUT_DTYPE = jnp.float32


def _round_up(x, m):
    return (x + m - 1) // m * m


def embedding_kernel(x_ref, wh_ref, w1_ref, b1_ref, w2_ref, b2_ref, out_ref):
    # x arrives as f32 straight from HBM (no wrapper-side pad/cast pass);
    # cast to bf16 in VMEM for the MXU.  K = 364 is handled by Mosaic's
    # internal zero-padding of the contraction dimension.
    x = x_ref[...].astype(jnp.bfloat16)

    # H = x @ Wh   (no bias); bf16 operands, f32 accumulation on the MXU.
    h = jnp.dot(x, wh_ref[...], preferred_element_type=jnp.float32)

    def highway(h, w_ref, b_ref):
        # Fused gate|transform matmul: (tm,128)bf16 @ (128,256)bf16 -> (tm,256)f32.
        # The bias stays a VPU broadcast+add (VPU has ample slack here).
        gt = jnp.dot(h.astype(jnp.bfloat16), w_ref[...],
                     preferred_element_type=jnp.float32) + b_ref[...]
        g = jax.nn.sigmoid(gt[:, :D_MODEL])
        t = jnp.maximum(gt[:, D_MODEL:], 0.0)
        # TODO(synk): F.dropout(t, 0.2) from the reference (training mode) is
        # omitted; this matches eval semantics.
        return g * (t - h) + h          # == g*t + (1-g)*h

    h = highway(h, w1_ref, b1_ref)
    h = highway(h, w2_ref, b2_ref)
    out_ref[...] = h.astype(out_ref.dtype)


def init_params(key):
    """PyTorch-Linear-style init: U(-1/sqrt(fan_in), 1/sqrt(fan_in)). Weights (in,out)."""
    ks = jax.random.split(key, 9)

    def lin_w(k, fan_in, fan_out):
        bound = 1.0 / jnp.sqrt(fan_in)
        return jax.random.uniform(k, (fan_in, fan_out), jnp.float32, -bound, bound)

    def lin_b(k, fan_in, fan_out):
        bound = 1.0 / jnp.sqrt(fan_in)
        return jax.random.uniform(k, (1, fan_out), jnp.float32, -bound, bound)

    return {
        "wh":  lin_w(ks[0], D_IN, D_MODEL),
        "wg1": lin_w(ks[1], D_MODEL, D_MODEL),
        "bg1": lin_b(ks[2], D_MODEL, D_MODEL),
        "wt1": lin_w(ks[3], D_MODEL, D_MODEL),
        "bt1": lin_b(ks[4], D_MODEL, D_MODEL),
        "wg2": lin_w(ks[5], D_MODEL, D_MODEL),
        "bg2": lin_b(ks[6], D_MODEL, D_MODEL),
        "wt2": lin_w(ks[7], D_MODEL, D_MODEL),
        "bt2": lin_b(ks[8], D_MODEL, D_MODEL),
    }


def prepare_params(params):
    """One-time: fuse gate|transform weights, cast matmul operands to bf16."""
    w1 = jnp.concatenate([params["wg1"], params["wt1"]], axis=1)   # (128, 256)
    b1 = jnp.concatenate([params["bg1"], params["bt1"]], axis=1)   # (1, 256)
    w2 = jnp.concatenate([params["wg2"], params["wt2"]], axis=1)
    b2 = jnp.concatenate([params["bg2"], params["bt2"]], axis=1)
    return {
        "wh": params["wh"].astype(jnp.bfloat16),   # (364, 128), unpadded
        "w1": w1.astype(jnp.bfloat16),
        "b1": b1.astype(jnp.float32),
        "w2": w2.astype(jnp.bfloat16),
        "b2": b2.astype(jnp.float32),
    }


@jax.jit
def embedding_forward(x, prepped):
    lead = x.shape[:-1]
    n = 1
    for d in lead:
        n *= d

    # No wrapper-side pad/cast and no row-pad copy: the kernel streams the f32
    # rows straight from HBM, cutting total HBM traffic roughly in half.
    x2 = x.reshape(n, D_IN)

    # Tile the row dim.  Aim for >= 2 grid steps so the "parallel" axis can
    # shard across v7x's two TensorCores; cap at TILE_M_MAX to bound VMEM.
    tile_m = max(8, min(TILE_M_MAX, _round_up((n + 1) // 2, 8)))
    grid = (pl.cdiv(n, tile_m),)   # partial edge block: OOB writes are masked

    const = lambda i: (0, 0)       # weights/biases resident in VMEM across the grid

    out_bytes = jnp.dtype(OUT_DTYPE).itemsize
    weight_bytes = (D_IN * D_MODEL * 2                    # wh (bf16)
                    + 2 * (D_MODEL * 2 * D_MODEL * 2)     # w1, w2 (bf16)
                    + 2 * (2 * D_MODEL * 4))              # b1, b2 (f32)
    cost = pl.CostEstimate(
        flops=n * (2 * D_IN * D_MODEL + 2 * (2 * D_MODEL * 2 * D_MODEL)),
        transcendentals=n * 2 * D_MODEL,                  # one sigmoid per gate elem
        bytes_accessed=n * (D_IN * 4 + D_MODEL * out_bytes) + weight_bytes,
    )

    out = pl.pallas_call(
        embedding_kernel,
        out_shape=jax.ShapeDtypeStruct((n, D_MODEL), OUT_DTYPE),
        grid=grid,
        in_specs=[
            pl.BlockSpec((tile_m, D_IN), lambda i: (i, 0)),        # x (streamed, f32)
            pl.BlockSpec((D_IN, D_MODEL), const),                  # wh
            pl.BlockSpec((D_MODEL, 2 * D_MODEL), const),           # w1 (g|t fused)
            pl.BlockSpec((1, 2 * D_MODEL), const),                 # b1
            pl.BlockSpec((D_MODEL, 2 * D_MODEL), const),           # w2
            pl.BlockSpec((1, 2 * D_MODEL), const),                 # b2
        ],
        out_specs=pl.BlockSpec((tile_m, D_MODEL), lambda i: (i, 0)),
        compiler_params=pltpu.CompilerParams(
            dimension_semantics=("parallel",),
            vmem_limit_bytes=VMEM_LIMIT_BYTES,
        ),
        cost_estimate=cost,
    )(x2, prepped["wh"], prepped["w1"], prepped["b1"], prepped["w2"], prepped["b2"])

    return out.reshape(*lead, D_MODEL)


if __name__ == "__main__":
    key = jax.random.PRNGKey(0)
    k_x, k_p = jax.random.split(key)

    batch, seq = 2, 8
    x = jax.random.normal(k_x, (batch, seq, D_IN), jnp.float32)
    params = init_params(k_p)
    prepped = prepare_params(params)

    out = embedding_forward(x, prepped)
    out = jax.block_until_ready(out)

    assert out.shape == (batch, seq, D_MODEL), out.shape
    assert out.dtype == OUT_DTYPE, out.dtype
    assert bool(jnp.all(jnp.isfinite(out))), "non-finite output"
    print("KERNEL_OK")
</pallas_src>

<mosaic_0001>
module attributes {stable_mosaic.version = 11 : i64} {
  func.func @embedding_kernel(%arg0: i32, %arg1: memref<8x364xf32, #tpu.memory_space<vmem>>, %arg2: memref<364x128xbf16, #tpu.memory_space<vmem>>, %arg3: memref<128x256xbf16, #tpu.memory_space<vmem>>, %arg4: memref<1x256xf32, #tpu.memory_space<vmem>>, %arg5: memref<128x256xbf16, #tpu.memory_space<vmem>>, %arg6: memref<1x256xf32, #tpu.memory_space<vmem>>, %arg7: memref<8x128xf32, #tpu.memory_space<vmem>>) attributes {dimension_semantics = [#tpu.dimension_semantics<parallel>], iteration_bounds = array<i64: 2>, scalar_prefetch = 0 : i64, scratch_operands = 0 : i64, tpu.core_type = #tpu.core_type<tc>, window_params = [{transform_indices = @transform_0, window_bounds = array<i64: 8, 364>}, {pipeline_mode = #tpu.pipeline_mode<synchronous>, transform_indices = @transform_1, window_bounds = array<i64: 364, 128>}, {pipeline_mode = #tpu.pipeline_mode<synchronous>, transform_indices = @transform_2, window_bounds = array<i64: 128, 256>}, {pipeline_mode = #tpu.pipeline_mode<synchronous>, transform_indices = @transform_3, window_bounds = array<i64: 1, 256>}, {pipeline_mode = #tpu.pipeline_mode<synchronous>, transform_indices = @transform_4, window_bounds = array<i64: 128, 256>}, {pipeline_mode = #tpu.pipeline_mode<synchronous>, transform_indices = @transform_5, window_bounds = array<i64: 1, 256>}, {transform_indices = @transform_6, window_bounds = array<i64: 8, 128>}]} {
    %c0 = arith.constant 0 : index
    %c0_0 = arith.constant 0 : index
    %0 = vector.load %arg1[%c0, %c0_0] : memref<8x364xf32, #tpu.memory_space<vmem>>, vector<8x364xf32>
    %1 = arith.truncf %0 : vector<8x364xf32> to vector<8x364xbf16>
    %c0_1 = arith.constant 0 : index
    %c0_2 = arith.constant 0 : index
    %2 = vector.load %arg2[%c0_1, %c0_2] : memref<364x128xbf16, #tpu.memory_space<vmem>>, vector<364x128xbf16>
    %cst = arith.constant dense<0.000000e+00> : vector<8x128xf32>
    %3 = tpu.matmul %1, %2, %cst {dimension_numbers = #tpu.dot_dimension_numbers<[1], [0], [0], [1], [0, 0, 1, 1], [], []>} : vector<8x364xbf16>, vector<364x128xbf16>, vector<8x128xf32> -> vector<8x128xf32>
    %4 = arith.truncf %3 : vector<8x128xf32> to vector<8x128xbf16>
    %c0_3 = arith.constant 0 : index
    %c0_4 = arith.constant 0 : index
    %5 = vector.load %arg3[%c0_3, %c0_4] : memref<128x256xbf16, #tpu.memory_space<vmem>>, vector<128x256xbf16>
    %cst_5 = arith.constant dense<0.000000e+00> : vector<8x256xf32>
    %6 = tpu.matmul %4, %5, %cst_5 {dimension_numbers = #tpu.dot_dimension_numbers<[1], [0], [0], [1], [0, 0, 1, 1], [], []>} : vector<8x128xbf16>, vector<128x256xbf16>, vector<8x256xf32> -> vector<8x256xf32>
    %c0_6 = arith.constant 0 : index
    %c0_7 = arith.constant 0 : index
    %7 = vector.load %arg4[%c0_6, %c0_7] : memref<1x256xf32, #tpu.memory_space<vmem>>, vector<1x256xf32>
    %8 = vector.broadcast %7 : vector<1x256xf32> to vector<8x256xf32>
    %9 = arith.addf %6, %8 : vector<8x256xf32>
    %10 = vector.extract_strided_slice %9 {offsets = [0, 0], sizes = [8, 128], strides = [1, 1]} : vector<8x256xf32> to vector<8x128xf32>
    %11 = arith.negf %10 : vector<8x128xf32>
    %12 = math.exp %11 : vector<8x128xf32>
    %cst_8 = arith.constant 1.000000e+00 : f32
    %13 = vector.broadcast %cst_8 : f32 to vector<8x128xf32>
    %14 = arith.addf %13, %12 : vector<8x128xf32>
    %15 = arith.divf %13, %14 : vector<8x128xf32>
    %16 = vector.extract_strided_slice %9 {offsets = [0, 128], sizes = [8, 128], strides = [1, 1]} : vector<8x256xf32> to vector<8x128xf32>
    %cst_9 = arith.constant 0.000000e+00 : f32
    %17 = vector.broadcast %cst_9 : f32 to vector<8x128xf32>
    %18 = arith.maximumf %16, %17 : vector<8x128xf32>
    %19 = arith.subf %18, %3 : vector<8x128xf32>
    %20 = arith.mulf %15, %19 : vector<8x128xf32>
    %21 = arith.addf %20, %3 : vector<8x128xf32>
    %22 = arith.truncf %21 : vector<8x128xf32> to vector<8x128xbf16>
    %c0_10 = arith.constant 0 : index
    %c0_11 = arith.constant 0 : index
    %23 = vector.load %arg5[%c0_10, %c0_11] : memref<128x256xbf16, #tpu.memory_space<vmem>>, vector<128x256xbf16>
    %cst_12 = arith.constant dense<0.000000e+00> : vector<8x256xf32>
    %24 = tpu.matmul %22, %23, %cst_12 {dimension_numbers = #tpu.dot_dimension_numbers<[1], [0], [0], [1], [0, 0, 1, 1], [], []>} : vector<8x128xbf16>, vector<128x256xbf16>, vector<8x256xf32> -> vector<8x256xf32>
    %c0_13 = arith.constant 0 : index
    %c0_14 = arith.constant 0 : index
    %25 = vector.load %arg6[%c0_13, %c0_14] : memref<1x256xf32, #tpu.memory_space<vmem>>, vector<1x256xf32>
    %26 = vector.broadcast %25 : vector<1x256xf32> to vector<8x256xf32>
    %27 = arith.addf %24, %26 : vector<8x256xf32>
    %28 = vector.extract_strided_slice %27 {offsets = [0, 0], sizes = [8, 128], strides = [1, 1]} : vector<8x256xf32> to vector<8x128xf32>
    %29 = arith.negf %28 : vector<8x128xf32>
    %30 = math.exp %29 : vector<8x128xf32>
    %cst_15 = arith.constant 1.000000e+00 : f32
    %31 = vector.broadcast %cst_15 : f32 to vector<8x128xf32>
    %32 = arith.addf %31, %30 : vector<8x128xf32>
    %33 = arith.divf %31, %32 : vector<8x128xf32>
    %34 = vector.extract_strided_slice %27 {offsets = [0, 128], sizes = [8, 128], strides = [1, 1]} : vector<8x256xf32> to vector<8x128xf32>
    %cst_16 = arith.constant 0.000000e+00 : f32
    %35 = vector.broadcast %cst_16 : f32 to vector<8x128xf32>
    %36 = arith.maximumf %34, %35 : vector<8x128xf32>
    %37 = arith.subf %36, %21 : vector<8x128xf32>
    %38 = arith.mulf %33, %37 : vector<8x128xf32>
    %39 = arith.addf %38, %21 : vector<8x128xf32>
    %c0_17 = arith.constant 0 : index
    %c0_18 = arith.constant 0 : index
    %40 = vector.load %arg7[%c0_17, %c0_18] : memref<8x128xf32, #tpu.memory_space<vmem>>, vector<8x128xf32>
    tpu.vector_store %arg7[%c0_17, %c0_18], %39 {strides = array<i32>} : memref<8x128xf32, #tpu.memory_space<vmem>>, vector<8x128xf32>,
    return
  }
  func.func @transform_0(%arg0: i32) -> (i32, i32) {
    %c0_i32 = arith.constant 0 : i32
    %c0_i32_0 = arith.constant 0 : i32
    return %arg0, %c0_i32 : i32, i32
  }
  func.func @transform_1(%arg0: i32) -> (i32, i32) {
    %c0_i32 = arith.constant 0 : i32
    %c0_i32_0 = arith.constant 0 : i32
    %c0_i32_1 = arith.constant 0 : i32
    return %c0_i32, %c0_i32_0 : i32, i32
  }
  func.func @transform_2(%arg0: i32) -> (i32, i32) {
    %c0_i32 = arith.constant 0 : i32
    %c0_i32_0 = arith.constant 0 : i32
    %c0_i32_1 = arith.constant 0 : i32
    return %c0_i32, %c0_i32_0 : i32, i32
  }
  func.func @transform_3(%arg0: i32) -> (i32, i32) {
    %c0_i32 = arith.constant 0 : i32
    %c0_i32_0 = arith.constant 0 : i32
    %c0_i32_1 = arith.constant 0 : i32
    return %c0_i32, %c0_i32_0 : i32, i32
  }
  func.func @transform_4(%arg0: i32) -> (i32, i32) {
    %c0_i32 = arith.constant 0 : i32
    %c0_i32_0 = arith.constant 0 : i32
    %c0_i32_1 = arith.constant 0 : i32
    return %c0_i32, %c0_i32_0 : i32, i32
  }
  func.func @transform_5(%arg0: i32) -> (i32, i32) {
    %c0_i32 = arith.constant 0 : i32
    %c0_i32_0 = arith.constant 0 : i32
    %c0_i32_1 = arith.constant 0 : i32
    return %c0_i32, %c0_i32_0 : i32, i32
  }
  func.func @transform_6(%arg0: i32) -> (i32, i32) {
    %c0_i32 = arith.constant 0 : i32
    %c0_i32_0 = arith.constant 0 : i32
    return %arg0, %c0_i32 : i32, i32
  }
}

</mosaic_0001>

<llo_original>
// kernel: embedding_forward.1
$region0: #{embedding_forward.1}
  #allocation0 [shape = 'u32[]', space=smem, size = 0x4, offset = 0x4, fixed_abs, tag = 'smem constant byte address 0x4 - core index']
  #allocation1 [shape = 'u32[144,128]{1,0:T(1,128)}', space=vmem, size = 0x12000, scoped, tag = 'internal scratch']
  %s0 = inlined_call_operand.hbm [shape: f32[16,364], index: 0, kind: input, shape index: {}]
  %s1 = inlined_call_operand.hbm [shape: bf16[364,128], index: 1, kind: input, shape index: {}]
  %s2 = inlined_call_operand.hbm [shape: bf16[128,256], index: 2, kind: input, shape index: {}]
  %s3 = inlined_call_operand.vmem [shape: f32[1,256], index: 3, kind: input, shape index: {}]
  %s4 = inlined_call_operand.hbm [shape: bf16[128,256], index: 4, kind: input, shape index: {}]
  %s5 = inlined_call_operand.vmem [shape: f32[1,256], index: 5, kind: input, shape index: {}]
  %s6 = inlined_call_operand.hbm [shape: f32[16,128], index: 6, kind: output, shape index: {}]
  %s7 = sld [smem:[#allocation0]]
  $region73: #{embedding_forward.1} parent=0
    _
  %s9 = ssub.s32 1, %s7
  %s10 = scalar_select 0, %s9, %s7
  $region1: #{embedding_forward.1} parent=0
    #allocation2 [shape = 'u8[24576]{0}', space=vmem, size = 0x6000, scoped, tag = 'input window, operand 0']
    #allocation3 [shape = 's32[2]{0}', space=sflag, size = 0x8, scoped, tag = 'scoped memory for embedding_forward.1']
    #allocation4 [shape = 's32[2]{0}', space=sflag, size = 0x8, scoped, tag = 'scoped memory for embedding_forward.1']
    #allocation5 [shape = 'u8[94208]{0}', space=vmem, size = 0x17000, scoped, tag = 'input window, operand 1, single buffered']
    #allocation6 [shape = 's32[1]{0}', space=sflag, size = 0x4, scoped, tag = 'scoped memory for embedding_forward.1']
    #allocation7 [shape = 'u8[65536]{0}', space=vmem, size = 0x10000, scoped, tag = 'input window, operand 2, single buffered']
    #allocation8 [shape = 'u8[65536]{0}', space=vmem, size = 0x10000, scoped, tag = 'input window, operand 4, single buffered']
    #allocation9 [shape = 's32[1]{0}', space=sflag, size = 0x4, scoped, tag = 'scoped memory for embedding_forward.1']
    #allocation10 [shape = 'u8[8192]{0}', space=vmem, size = 0x2000, scoped, tag = 'output window, operand 0']
    %11 = vsyncpa [#allocation3], 0
    %s12 = scalar_lea.sflag [#allocation3], 1
    %13 = vsyncpa %s12, 0
    %14 = vsyncpa [#allocation6], 0
    %15 = vsyncpa [#allocation9], 0
    %16 = vsyncpa [#allocation4], 0
    %s17 = scalar_lea.sflag [#allocation4], 1
    %18 = vsyncpa %s17, 0
    loop: start=0, step=1, limit=4
    $region2: #{embedding_forward.1} parent=1 // loop_pre_header
      _
    $region3: #{embedding_forward.1} parent=1 // loop_header
      %s20 = sphi 0, %s24
      %p21 = scmp.ge.s32.totalorder %s20, 4
      %s30 = sphi 0, %s32
      %s33 = sphi 0, %s30
      %s34 = sphi 0, %s33
      %s50 = sphi 0, %s34
      %s54 = sphi 0, %s54
      %s56 = sphi 0, %s54
      %s57 = sphi 0, %s56
      %s71 = sphi 0, %s57
      %s75 = sphi 0, %s75
      %s77 = sphi 0, %s75
      %s78 = sphi 0, %s77
      %s92 = sphi 0, %s78
      %s96 = sphi 0, %s96
      %s98 = sphi 0, %s96
      %s99 = sphi 0, %s98
      %s113 = sphi 0, %s99
      %s117 = sphi 0, %s117
      %s119 = sphi 0, %s117
      %s120 = sphi 0, %s119
      %s134 = sphi 0, %s120
      %s138 = sphi 0, %s138
      %s140 = sphi 0, %s138
      %s141 = sphi 0, %s140
      %s155 = sphi 0, %s141
      %s161 = sphi 0, %s163
      %s164 = sphi 0, %s161
      %s165 = sphi 0, %s164
      %s181 = sphi 0, %s165
    $region4: #{embedding_forward.1} parent=1 // loop_header_branch
      %23 = sbr.rel (%p21) target = $region8
    $region5: #{embedding_forward.1} parent=1 // loop_body
      %s25 = ssub.s32 %s20, 1
      %s26 = ssub.s32 %s20, 2
      %s27 = sadd.s32 %s20, 1
      %s28 = ssub.s32 %s20, %s27
      %p29 = scmp.eq.s32.totalorder %s28, 0
      %s31 = sadd.s32 %s30, 1
      %s32 = scalar_select %p29, %s30, %s31
      %p35 = pneg %p29
      %p36 = scmp.eq.s32.totalorder %s20, 1
      %p37 = por %p35, %p36
      %p38 = scmp.ne.s32.totalorder %s30, %s33
      %p39 = scmp.eq.s32.totalorder %s20, 0
      %p40 = por %p38, %p39
      %p41 = scmp.ne.s32.totalorder %s30, %s33
      %p42 = scmp.eq.s32.totalorder %s25, 1
      %p43 = por %p41, %p42
      %p44 = scmp.ne.s32.totalorder %s33, %s34
      %p45 = scmp.eq.s32.totalorder %s25, 0
      %p46 = por %p44, %p45
      %p47 = scmp.ne.s32.totalorder %s33, %s34
      %p48 = scmp.eq.s32.totalorder %s26, 1
      %p49 = por %p47, %p48
      %p51 = scmp.ne.s32.totalorder %s34, %s50
      %p52 = scmp.eq.s32.totalorder %s26, 0
      %p53 = por %p51, %p52
      %s55 = sadd.s32 %s54, 1
      %p58 = scmp.eq.s32.totalorder %s20, 1
      %p59 = scmp.ne.s32.totalorder %s54, %s56
      %p60 = scmp.eq.s32.totalorder %s20, 0
      %p61 = por %p59, %p60
      %p62 = scmp.ne.s32.totalorder %s54, %s56
      %p63 = scmp.eq.s32.totalorder %s25, 1
      %p64 = por %p62, %p63
      %p65 = scmp.ne.s32.totalorder %s56, %s57
      %p66 = scmp.eq.s32.totalorder %s25, 0
      %p67 = por %p65, %p66
      %p68 = scmp.ne.s32.totalorder %s56, %s57
      %p69 = scmp.eq.s32.totalorder %s26, 1
      %p70 = por %p68, %p69
      %p72 = scmp.ne.s32.totalorder %s57, %s71
      %p73 = scmp.eq.s32.totalorder %s26, 0
      %p74 = por %p72, %p73
      %s76 = sadd.s32 %s75, 1
      %p79 = scmp.eq.s32.totalorder %s20, 1
      %p80 = scmp.ne.s32.totalorder %s75, %s77
      %p81 = scmp.eq.s32.totalorder %s20, 0
      %p82 = por %p80, %p81
      %p83 = scmp.ne.s32.totalorder %s75, %s77
      %p84 = scmp.eq.s32.totalorder %s25, 1
      %p85 = por %p83, %p84
      %p86 = scmp.ne.s32.totalorder %s77, %s78
      %p87 = scmp.eq.s32.totalorder %s25, 0
      %p88 = por %p86, %p87
      %p89 = scmp.ne.s32.totalorder %s77, %s78
      %p90 = scmp.eq.s32.totalorder %s26, 1
      %p91 = por %p89, %p90
      %p93 = scmp.ne.s32.totalorder %s78, %s92
      %p94 = scmp.eq.s32.totalorder %s26, 0
      %p95 = por %p93, %p94
      %s97 = sadd.s32 %s96, 1
      %p100 = scmp.eq.s32.totalorder %s20, 1
      %p101 = scmp.ne.s32.totalorder %s96, %s98
      %p102 = scmp.eq.s32.totalorder %s20, 0
      %p103 = por %p101, %p102
      %p104 = scmp.ne.s32.totalorder %s96, %s98
      %p105 = scmp.eq.s32.totalorder %s25, 1
      %p106 = por %p104, %p105
      %p107 = scmp.ne.s32.totalorder %s98, %s99
      %p108 = scmp.eq.s32.totalorder %s25, 0
      %p109 = por %p107, %p108
      %p110 = scmp.ne.s32.totalorder %s98, %s99
      %p111 = scmp.eq.s32.totalorder %s26, 1
      %p112 = por %p110, %p111
      %p114 = scmp.ne.s32.totalorder %s99, %s113
      %p115 = scmp.eq.s32.totalorder %s26, 0
      %p116 = por %p114, %p115
      %s118 = sadd.s32 %s117, 1
      %p121 = scmp.eq.s32.totalorder %s20, 1
      %p122 = scmp.ne.s32.totalorder %s117, %s119
      %p123 = scmp.eq.s32.totalorder %s20, 0
      %p124 = por %p122, %p123
      %p125 = scmp.ne.s32.totalorder %s117, %s119
      %p126 = scmp.eq.s32.totalorder %s25, 1
      %p127 = por %p125, %p126
      %p128 = scmp.ne.s32.totalorder %s119, %s120
      %p129 = scmp.eq.s32.totalorder %s25, 0
      %p130 = por %p128, %p129
      %p131 = scmp.ne.s32.totalorder %s119, %s120
      %p132 = scmp.eq.s32.totalorder %s26, 1
      %p133 = por %p131, %p132
      %p135 = scmp.ne.s32.totalorder %s120, %s134
      %p136 = scmp.eq.s32.totalorder %s26, 0
      %p137 = por %p135, %p136
      %s139 = sadd.s32 %s138, 1
      %p142 = scmp.eq.s32.totalorder %s20, 1
      %p143 = scmp.ne.s32.totalorder %s138, %s140
      %p144 = scmp.eq.s32.totalorder %s20, 0
      %p145 = por %p143, %p144
      %p146 = scmp.ne.s32.totalorder %s138, %s140
      %p147 = scmp.eq.s32.totalorder %s25, 1
      %p148 = por %p146, %p147
      %p149 = scmp.ne.s32.totalorder %s140, %s141
      %p150 = scmp.eq.s32.totalorder %s25, 0
      %p151 = por %p149, %p150
      %p152 = scmp.ne.s32.totalorder %s140, %s141
      %p153 = scmp.eq.s32.totalorder %s26, 1
      %p154 = por %p152, %p153
      %p156 = scmp.ne.s32.totalorder %s141, %s155
      %p157 = scmp.eq.s32.totalorder %s26, 0
      %p158 = por %p156, %p157
      %s159 = ssub.s32 %s20, %s27
      %p160 = scmp.eq.s32.totalorder %s159, 0
      %s162 = sadd.s32 %s161, 1
      %s163 = scalar_select %p160, %s161, %s162
      %p166 = pneg %p160
      %p167 = scmp.eq.s32.totalorder %s20, 1
      %p168 = por %p166, %p167
      %p169 = scmp.ne.s32.totalorder %s161, %s164
      %p170 = scmp.eq.s32.totalorder %s20, 0
      %p171 = por %p169, %p170
      %p172 = scmp.ne.s32.totalorder %s161, %s164
      %p173 = scmp.eq.s32.totalorder %s25, 1
      %p174 = por %p172, %p173
      %p175 = scmp.ne.s32.totalorder %s164, %s165
      %p176 = scmp.eq.s32.totalorder %s25, 0
      %p177 = por %p175, %p176
      %p178 = scmp.ne.s32.totalorder %s164, %s165
      %p179 = scmp.eq.s32.totalorder %s26, 1
      %p180 = por %p178, %p179
      %p182 = scmp.ne.s32.totalorder %s165, %s181
      %p183 = scmp.eq.s32.totalorder %s26, 0
      %p184 = por %p182, %p183
      %p185 = scmp.le.s32.totalorder 1, %s20
      %p186 = scmp.lt.s32.totalorder %s20, 3
      %p187 = pnand %p185, %p186
      %p188 = pneg %p187
      // Predicated region
      $region9: #{embedding_forward.1} parent=5 // pred_check
        _
      $region10: #{embedding_forward.1} parent=5 // pred_check_branch
        %190 = sbr.rel (%p187) target = $region12
      $region11: #{embedding_forward.1} parent=5 // pred_region
        %s191 = ssub.s32 %s20, 1
        // Predicated region
        $region13: #{embedding_forward.1} parent=11 // pred_check
          %p192 = pneg %p67
        $region14: #{embedding_forward.1} parent=11 // pred_check_branch
          %194 = sbr.rel (%p192) target = $region16
        $region15: #{embedding_forward.1} parent=11 // pred_region
          %s196 = ssub.s32 2944, 2944
          %197 = vsyncadd [#allocation6], %s196
          %s198 = sshll.u32 [#allocation5], 4
          %s199 = int_to_ptr.vmem [resolvable:$true] %s198
          %204 = dma.hbm_to_vmem [thread:$0]  %s1, 2944, %s199, [#allocation6], 64, 64, 4
        $region16: #{embedding_forward.1} parent=11 // pred_fallthru
          _
        // Predicated region
        $region17: #{embedding_forward.1} parent=11 // pred_check
          %p205 = pneg %p88
        $region18: #{embedding_forward.1} parent=11 // pred_check_branch
          %207 = sbr.rel (%p205) target = $region20
        $region19: #{embedding_forward.1} parent=11 // pred_region
          %s209 = ssub.s32 2048, 2048
          %210 = vsyncadd [#allocation6], %s209
          %s211 = sshll.u32 [#allocation7], 4
          %s212 = int_to_ptr.vmem [resolvable:$true] %s211
          %217 = dma.hbm_to_vmem [thread:$0]  %s2, 2048, %s212, [#allocation6], 128, 128, 8
        $region20: #{embedding_forward.1} parent=11 // pred_fallthru
          _
        // Predicated region
        $region21: #{embedding_forward.1} parent=11 // pred_check
          %p218 = pneg %p109
        $region22: #{embedding_forward.1} parent=11 // pred_check_branch
          %220 = sbr.rel (%p218) target = $region24
        $region23: #{embedding_forward.1} parent=11 // pred_region
          _
        $region24: #{embedding_forward.1} parent=11 // pred_fallthru
          _
        // Predicated region
        $region25: #{embedding_forward.1} parent=11 // pred_check
          %p221 = pneg %p130
        $region26: #{embedding_forward.1} parent=11 // pred_check_branch
          %223 = sbr.rel (%p221) target = $region28
        $region27: #{embedding_forward.1} parent=11 // pred_region
          %s225 = ssub.s32 2048, 2048
          %226 = vsyncadd [#allocation9], %s225
          %s227 = sshll.u32 [#allocation8], 4
          %s228 = int_to_ptr.vmem [resolvable:$true] %s227
          %233 = dma.hbm_to_vmem [thread:$0]  %s4, 2048, %s228, [#allocation9], 128, 128, 8
        $region28: #{embedding_forward.1} parent=11 // pred_fallthru
          _
        // Predicated region
        $region29: #{embedding_forward.1} parent=11 // pred_check
          %p234 = pneg %p151
        $region30: #{embedding_forward.1} parent=11 // pred_check_branch
          %236 = sbr.rel (%p234) target = $region32
        $region31: #{embedding_forward.1} parent=11 // pred_region
          _
        $region32: #{embedding_forward.1} parent=11 // pred_fallthru
          _
      $region12: #{embedding_forward.1} parent=5 // pred_fallthru
        _
      %p237 = scmp.lt.s32.totalorder %s20, 2
      // Predicated region
      $region33: #{embedding_forward.1} parent=5 // pred_check
        %p238 = pneg %p237
      $region34: #{embedding_forward.1} parent=5 // pred_check_branch
        %240 = sbr.rel (%p238) target = $region36
      $region35: #{embedding_forward.1} parent=5 // pred_region
        // Predicated region
        $region37: #{embedding_forward.1} parent=35 // pred_check
          %p241 = pneg %p40
        $region38: #{embedding_forward.1} parent=35 // pred_check_branch
          %243 = sbr.rel (%p241) target = $region40
        $region39: #{embedding_forward.1} parent=35 // pred_region
          %s244 = sand.u32 %s30, 1
          %s245 = scalar_lea.sflag [#allocation3], %s244
          %s246 = sand.u32 %s30, 1
          %s247 = smul.addr %s246, 24
          %s248 = scalar_lea.vmem [#allocation2], %s247
          %s250 = ssub.s32 384, 384
          %251 = vsyncadd %s245, %s250
          %s252 = smul.addr %s20, 3
          %s253 = smul.addr %s252, 128
          %s254 = scalar_lea.hbm %s0, %s253
          %s256 = sshll.u32 %s248, 4
          %s257 = int_to_ptr.vmem [resolvable:$true] %s256
          %259 = dma.hbm_to_vmem [thread:$0]  %s254, 384, %s257, %s245
        $region40: #{embedding_forward.1} parent=35 // pred_fallthru
          _
      $region36: #{embedding_forward.1} parent=5 // pred_fallthru
        _
      %p260 = scmp.le.s32.totalorder 1, %s20
      %p261 = scmp.lt.s32.totalorder %s20, 3
      %p262 = pnand %p260, %p261
      %p263 = pneg %p262
      // Predicated region
      $region41: #{embedding_forward.1} parent=5 // pred_check
        _
      $region42: #{embedding_forward.1} parent=5 // pred_check_branch
        %265 = sbr.rel (%p262) target = $region44
      $region43: #{embedding_forward.1} parent=5 // pred_region
        %s266 = ssub.s32 %s20, 1
        %s267 = sand.u32 %s33, 1
        %s268 = scalar_lea.sflag [#allocation3], %s267
        %s269 = sand.u32 %s33, 1
        %s270 = smul.addr %s269, 24
        %s271 = scalar_lea.vmem [#allocation2], %s270
        // Predicated region
        $region45: #{embedding_forward.1} parent=43 // pred_check
          %p272 = pneg %p46
        $region46: #{embedding_forward.1} parent=43 // pred_check_branch
          %274 = sbr.rel (%p272) target = $region48
        $region47: #{embedding_forward.1} parent=43 // pred_region
          %275 = dma.done %s268, 384
        $region48: #{embedding_forward.1} parent=43 // pred_fallthru
          _
        // Predicated region
        $region49: #{embedding_forward.1} parent=43 // pred_check
          %p276 = pneg %p67
        $region50: #{embedding_forward.1} parent=43 // pred_check_branch
          %278 = sbr.rel (%p276) target = $region52
        $region51: #{embedding_forward.1} parent=43 // pred_region
          %279 = dma.done [#allocation6], 2944
        $region52: #{embedding_forward.1} parent=43 // pred_fallthru
          _
        // Predicated region
        $region53: #{embedding_forward.1} parent=43 // pred_check
          %p280 = pneg %p88
        $region54: #{embedding_forward.1} parent=43 // pred_check_branch
          %282 = sbr.rel (%p280) target = $region56
        $region55: #{embedding_forward.1} parent=43 // pred_region
          %283 = dma.done [#allocation6], 2048
        $region56: #{embedding_forward.1} parent=43 // pred_fallthru
          _
        // Predicated region
        $region57: #{embedding_forward.1} parent=43 // pred_check
          %p284 = pneg %p130
        $region58: #{embedding_forward.1} parent=43 // pred_check_branch
          %286 = sbr.rel (%p284) target = $region60
        $region59: #{embedding_forward.1} parent=43 // pred_region
          %287 = dma.done [#allocation9], 2048
        $region60: #{embedding_forward.1} parent=43 // pred_fallthru
          _
        %s288 = sand.u32 %s33, 1
        %s289 = scalar_lea.sflag [#allocation3], %s288
        %s290 = sand.u32 %s33, 1
        %s291 = smul.addr %s290, 24
        %s292 = scalar_lea.vmem [#allocation2], %s291
        %p293 = pneg %p46
        %p294 = pneg %p43
        %p295 = pneg %p67
        %p296 = pneg %p64
        %p297 = pneg %p88
        %p298 = pneg %p85
        %p299 = pneg %p109
        %p300 = pneg %p106
        %p301 = pneg %p130
        %p302 = pneg %p127
        %p303 = pneg %p151
        %p304 = pneg %p148
        %p305 = pneg %p177
        %p306 = pneg %p174
        %s307 = sand.u32 %s164, 1
        %s308 = scalar_lea.sflag [#allocation4], %s307
        %s309 = sand.u32 %s164, 1
        %s310 = smul.addr %s309, 8
        %s311 = scalar_lea.vmem [#allocation10], %s310
        %v313 = vld [vmem:[%s271] sm:$0xff]
        %v314 = vld [vmem:[%s271 + $0x8] sm:$0xff]
        %v315 = vld [vmem:[%s271 + $0x10] sm:$0xff]
        %v316 = vpack.c.bf16 %v313, %v313
        %v317 = vpack.c.bf16 %v314, %v314
        %v318 = vpack.c.bf16 %v315, %v315
        %v319 = vld [vmem:[#allocation5] sm:$0xf]
        %v320 = vld [vmem:[#allocation5 + $0x4] sm:$0xf]
        %v321 = vld [vmem:[#allocation5 + $0x8] sm:$0xf]
        %v322 = vld [vmem:[#allocation5 + $0xc] sm:$0xf]
        %v323 = vld [vmem:[#allocation5 + $0x10] sm:$0xf]
        %v324 = vld [vmem:[#allocation5 + $0x14] sm:$0xf]
        %v325 = vld [vmem:[#allocation5 + $0x18] sm:$0xf]
        %v326 = vld [vmem:[#allocation5 + $0x1c] sm:$0xf]
        %v327 = vld [vmem:[#allocation5 + $0x20] sm:$0xf]
        %v328 = vld [vmem:[#allocation5 + $0x24] sm:$0xf]
        %v329 = vld [vmem:[#allocation5 + $0x28] sm:$0xf]
        %v330 = vld [vmem:[#allocation5 + $0x2c] sm:$0xf]
        %v331 = vld [vmem:[#allocation5 + $0x30] sm:$0xf]
        %v332 = vld [vmem:[#allocation5 + $0x34] sm:$0xf]
        %v333 = vld [vmem:[#allocation5 + $0x38] sm:$0xf]
        %v334 = vld [vmem:[#allocation5 + $0x3c] sm:$0xf]
        %v335 = vld [vmem:[#allocation5 + $0x40] sm:$0xf]
        %v336 = vld [vmem:[#allocation5 + $0x44] sm:$0xf]
        %v337 = vld [vmem:[#allocation5 + $0x48] sm:$0xf]
        %v338 = vld [vmem:[#allocation5 + $0x4c] sm:$0xf]
        %v339 = vld [vmem:[#allocation5 + $0x50] sm:$0xf]
        %v340 = vld [vmem:[#allocation5 + $0x54] sm:$0xf]
        %v341 = vld [vmem:[#allocation5 + $0x58] sm:$0xf]
        %v342 = vld [vmem:[#allocation5 + $0x5c] sm:$0xf]
        %v343 = vld [vmem:[#allocation5 + $0x60] sm:$0xf]
        %v344 = vld [vmem:[#allocation5 + $0x64] sm:$0xf]
        %v345 = vld [vmem:[#allocation5 + $0x68] sm:$0xf]
        %v346 = vld [vmem:[#allocation5 + $0x6c] sm:$0xf]
        %v347 = vld [vmem:[#allocation5 + $0x70] sm:$0xf]
        %v348 = vld [vmem:[#allocation5 + $0x74] sm:$0xf]
        %v349 = vld [vmem:[#allocation5 + $0x78] sm:$0xf]
        %v350 = vld [vmem:[#allocation5 + $0x7c] sm:$0xf]
        %v351 = vld [vmem:[#allocation5 + $0x80] sm:$0xf]
        %v352 = vld [vmem:[#allocation5 + $0x84] sm:$0xf]
        %v353 = vld [vmem:[#allocation5 + $0x88] sm:$0xf]
        %v354 = vld [vmem:[#allocation5 + $0x8c] sm:$0xf]
        %v355 = vld [vmem:[#allocation5 + $0x90] sm:$0xf]
        %v356 = vld [vmem:[#allocation5 + $0x94] sm:$0xf]
        %v357 = vld [vmem:[#allocation5 + $0x98] sm:$0xf]
        %v358 = vld [vmem:[#allocation5 + $0x9c] sm:$0xf]
        %v359 = vld [vmem:[#allocation5 + $0xa0] sm:$0xf]
        %v360 = vld [vmem:[#allocation5 + $0xa4] sm:$0xf]
        %v361 = vld [vmem:[#allocation5 + $0xa8] sm:$0xf]
        %v362 = vld [vmem:[#allocation5 + $0xac] sm:$0xf]
        %v363 = vld [vmem:[#allocation5 + $0xb0] sm:$0xf]
        %v364 = vld [vmem:[#allocation5 + $0xb4] sm:$0x3]
        %v411 = vunpack.c.l.b16 %v319
        %v412 = vunpack.c.l.b16 %v320
        %v413 = vunpack.c.l.b16 %v321
        %v414 = vunpack.c.l.b16 %v322
        %v415 = vunpack.c.l.b16 %v323
        %v416 = vunpack.c.l.b16 %v324
        %v417 = vunpack.c.l.b16 %v325
        %v418 = vunpack.c.l.b16 %v326
        %v419 = vunpack.c.l.b16 %v327
        %v420 = vunpack.c.l.b16 %v328
        %v421 = vunpack.c.l.b16 %v329
        %v422 = vunpack.c.l.b16 %v330
        %v423 = vunpack.c.l.b16 %v331
        %v424 = vunpack.c.l.b16 %v332
        %v425 = vunpack.c.l.b16 %v333
        %v426 = vunpack.c.l.b16 %v334
        %v427 = vunpack.c.l.b16 %v335
        %v428 = vunpack.c.l.b16 %v336
        %v429 = vunpack.c.l.b16 %v337
        %v430 = vunpack.c.l.b16 %v338
        %v431 = vunpack.c.l.b16 %v339
        %v432 = vunpack.c.l.b16 %v340
        %v433 = vunpack.c.l.b16 %v341
        %v434 = vunpack.c.l.b16 %v342
        %v435 = vunpack.c.l.b16 %v343
        %v436 = vunpack.c.l.b16 %v344
        %v437 = vunpack.c.l.b16 %v345
        %v438 = vunpack.c.l.b16 %v346
        %v439 = vunpack.c.l.b16 %v347
        %v440 = vunpack.c.l.b16 %v348
        %v441 = vunpack.c.l.b16 %v349
        %v442 = vunpack.c.l.b16 %v350
        %v443 = vunpack.c.l.b16 %v351
        %v444 = vunpack.c.l.b16 %v352
        %v445 = vunpack.c.l.b16 %v353
        %v446 = vunpack.c.l.b16 %v354
        %v447 = vunpack.c.l.b16 %v355
        %v448 = vunpack.c.l.b16 %v356
        %v449 = vunpack.c.l.b16 %v357
        %v450 = vunpack.c.l.b16 %v358
        %v451 = vunpack.c.l.b16 %v359
        %v452 = vunpack.c.l.b16 %v360
        %v453 = vunpack.c.l.b16 %v361
        %v454 = vunpack.c.l.b16 %v362
        %v455 = vunpack.c.l.b16 %v363
        %v456 = vunpack.c.l.b16 %v364
        %v457 = vpack.c.b16 %v412, %v411
        %v458 = vpack.c.b16 %v414, %v413
        %v459 = vpack.c.b16 %v416, %v415
        %v460 = vpack.c.b16 %v418, %v417
        %v461 = vpack.c.b16 %v420, %v419
        %v462 = vpack.c.b16 %v422, %v421
        %v463 = vpack.c.b16 %v424, %v423
        %v464 = vpack.c.b16 %v426, %v425
        %v465 = vpack.c.b16 %v428, %v427
        %v466 = vpack.c.b16 %v430, %v429
        %v467 = vpack.c.b16 %v432, %v431
        %v468 = vpack.c.b16 %v434, %v433
        %v469 = vpack.c.b16 %v436, %v435
        %v470 = vpack.c.b16 %v438, %v437
        %v471 = vpack.c.b16 %v440, %v439
        %v472 = vpack.c.b16 %v442, %v441
        %v473 = vpack.c.b16 %v444, %v443
        %v474 = vpack.c.b16 %v446, %v445
        %v475 = vpack.c.b16 %v448, %v447
        %v476 = vpack.c.b16 %v450, %v449
        %v477 = vpack.c.b16 %v452, %v451
        %v478 = vpack.c.b16 %v454, %v453
        %v479 = vpack.c.b16 %v456, %v455
        %vm502 = vcmask 883712
        %v504 = vsel %vm502, %v318, 0
        %vm506 = vcmask 1045504
        %v508 = vsel %vm506, %v479, 0
        %510 = vmatprep.subr.bf16.mxu0 0
        %511 = vmatpush1.bf16.msra.mxu0 %v464
        %512 = vmatprep.subr.bf16.mxu0 0
        %513 = vmatpush1.bf16.msra.mxu0 %v463
        %514 = vmatprep.subr.bf16.mxu0 0
        %515 = vmatpush1.bf16.msra.mxu0 %v462
        %516 = vmatprep.subr.bf16.mxu0 0
        %517 = vmatpush1.bf16.msra.mxu0 %v461
        %518 = vmatprep.subr.bf16.mxu0 0
        %519 = vmatpush1.bf16.msra.mxu0 %v460
        %520 = vmatprep.subr.bf16.mxu0 0
        %521 = vmatpush1.bf16.msra.mxu0 %v459
        %522 = vmatprep.subr.bf16.mxu0 0
        %523 = vmatpush1.bf16.msra.mxu0 %v458
        %524 = vmatprep.subr.bf16.mxu0 0
        %525 = vmatpush1.bf16.msra.mxu0 %v457
        %526 = vmatprep.subr.bf16.mxu0 0
        %527 = vmatpush2.bf16.msra.mxu0 %v472
        %528 = vmatprep.subr.bf16.mxu0 0
        %529 = vmatpush2.bf16.msra.mxu0 %v471
        %530 = vmatprep.subr.bf16.mxu0 0
        %531 = vmatpush2.bf16.msra.mxu0 %v470
        %532 = vmatprep.subr.bf16.mxu0 0
        %533 = vmatpush2.bf16.msra.mxu0 %v469
        %534 = vmatprep.subr.bf16.mxu0 0
        %535 = vmatpush2.bf16.msra.mxu0 %v468
        %536 = vmatprep.subr.bf16.mxu0 0
        %537 = vmatpush2.bf16.msra.mxu0 %v467
        %538 = vmatprep.subr.bf16.mxu0 0
        %539 = vmatpush2.bf16.msra.mxu0 %v466
        %540 = vmatprep.subr.bf16.mxu0 0
        %541 = vmatpush2.bf16.msra.mxu0 %v465
        %542 = vmatprep.mubr.bf16.mxu0 %v317
        %543 = vmatmul.mubr.bf16.gmra.mxu0 %v316
        %v544 = vpop.f32.mrf.mxu0
        %v545 = vadd.f32 0.0, %v544
        %v546 = vpop.f32.mrf.mxu0
        %v547 = vpop.f32.mrf.mxu0
        %v548 = vpop.f32.mrf.mxu0
        %549 = vdwg.mxu0
        %550 = vmatprep.subr.bf16.mxu0 0
        %551 = vmatpush1.bf16.msra.mxu0 0
        %552 = vmatprep.subr.bf16.mxu0 0
        %553 = vmatpush1.bf16.msra.mxu0 %v508
        %554 = vmatprep.subr.bf16.mxu0 0
        %555 = vmatpush1.bf16.msra.mxu0 %v478
        %556 = vmatprep.subr.bf16.mxu0 0
        %557 = vmatpush1.bf16.msra.mxu0 %v477
        %558 = vmatprep.subr.bf16.mxu0 0
        %559 = vmatpush1.bf16.msra.mxu0 %v476
        %560 = vmatprep.subr.bf16.mxu0 0
        %561 = vmatpush1.bf16.msra.mxu0 %v475
        %562 = vmatprep.subr.bf16.mxu0 0
        %563 = vmatpush1.bf16.msra.mxu0 %v474
        %564 = vmatprep.subr.bf16.mxu0 0
        %565 = vmatpush1.bf16.msra.mxu0 %v473
        %566 = vmatprep.subr.bf16.mxu0 0
        %567 = vmatpush2.bf16.msra.mxu0 0
        %568 = vmatprep.subr.bf16.mxu0 0
        %569 = vmatpush2.bf16.msra.mxu0 0
        %570 = vmatprep.subr.bf16.mxu0 0
        %571 = vmatpush2.bf16.msra.mxu0 0
        %572 = vmatprep.subr.bf16.mxu0 0
        %573 = vmatpush2.bf16.msra.mxu0 0
        %574 = vmatprep.subr.bf16.mxu0 0
        %575 = vmatpush2.bf16.msra.mxu0 0
        %576 = vmatprep.subr.bf16.mxu0 0
        %577 = vmatpush2.bf16.msra.mxu0 0
        %578 = vmatprep.subr.bf16.mxu0 0
        %579 = vmatpush2.bf16.msra.mxu0 0
        %580 = vmatprep.subr.bf16.mxu0 0
        %581 = vmatpush2.bf16.msra.mxu0 0
        %582 = vmatprep.mubr.bf16.mxu0 0
        %583 = vmatmul.mubr.bf16.gmra.mxu0 %v504
        %v584 = vpop.f32.mrf.mxu0
        %v585 = vadd.f32 %v545, %v584
        %v586 = vpop.f32.mrf.mxu0
        %v587 = vpop.f32.mrf.mxu0
        %v588 = vpop.f32.mrf.mxu0
        %589 = vdwg.mxu0
        %v590 = vpack.c.bf16 %v585, %v585
        %v591 = vld [vmem:[#allocation7] sm:$0xff]
        %v592 = vld [vmem:[#allocation7 + $0x8] sm:$0xff]
        %v593 = vld [vmem:[#allocation7 + $0x10] sm:$0xff]
        %v594 = vld [vmem:[#allocation7 + $0x18] sm:$0xff]
        %v595 = vld [vmem:[#allocation7 + $0x20] sm:$0xff]
        %v596 = vld [vmem:[#allocation7 + $0x28] sm:$0xff]
        %v597 = vld [vmem:[#allocation7 + $0x30] sm:$0xff]
        %v598 = vld [vmem:[#allocation7 + $0x38] sm:$0xff]
        %v599 = vld [vmem:[#allocation7 + $0x40] sm:$0xff]
        %v600 = vld [vmem:[#allocation7 + $0x48] sm:$0xff]
        %v601 = vld [vmem:[#allocation7 + $0x50] sm:$0xff]
        %v602 = vld [vmem:[#allocation7 + $0x58] sm:$0xff]
        %v603 = vld [vmem:[#allocation7 + $0x60] sm:$0xff]
        %v604 = vld [vmem:[#allocation7 + $0x68] sm:$0xff]
        %v605 = vld [vmem:[#allocation7 + $0x70] sm:$0xff]
        %v606 = vld [vmem:[#allocation7 + $0x78] sm:$0xff]
        %v607 = vld [vmem:[%s3] sm:$0x3]
        %v609 = vlaneseq
        %v610 = vshrl.u32 %v609, 7
        %v611 = vsub.s32 0, %v610
        %v612 = vrot.slane %v607, %v611
        %v613 = vlaneseq
        %v614 = vshrl.u32 %v613, 7
        %v615 = vsub.s32 1, %v614
        %v616 = vrot.slane %v607, %v615
        %v635 = vunpack.c.l.b16 %v591
        %v636 = vunpack.c.h.b16 %v591
        %v637 = vunpack.c.l.b16 %v592
        %v638 = vunpack.c.h.b16 %v592
        %v639 = vunpack.c.l.b16 %v593
        %v640 = vunpack.c.h.b16 %v593
        %v641 = vunpack.c.l.b16 %v594
        %v642 = vunpack.c.h.b16 %v594
        %v643 = vunpack.c.l.b16 %v595
        %v644 = vunpack.c.h.b16 %v595
        %v645 = vunpack.c.l.b16 %v596
        %v646 = vunpack.c.h.b16 %v596
        %v647 = vunpack.c.l.b16 %v597
        %v648 = vunpack.c.h.b16 %v597
        %v649 = vunpack.c.l.b16 %v598
        %v650 = vunpack.c.h.b16 %v598
        %v651 = vunpack.c.l.b16 %v599
        %v652 = vunpack.c.h.b16 %v599
        %v653 = vunpack.c.l.b16 %v600
        %v654 = vunpack.c.h.b16 %v600
        %v655 = vunpack.c.l.b16 %v601
        %v656 = vunpack.c.h.b16 %v601
        %v657 = vunpack.c.l.b16 %v602
        %v658 = vunpack.c.h.b16 %v602
        %v659 = vunpack.c.l.b16 %v603
        %v660 = vunpack.c.h.b16 %v603
        %v661 = vunpack.c.l.b16 %v604
        %v662 = vunpack.c.h.b16 %v604
        %v663 = vunpack.c.l.b16 %v605
        %v664 = vunpack.c.h.b16 %v605
        %v665 = vunpack.c.l.b16 %v606
        %v666 = vunpack.c.h.b16 %v606
        %v667 = vpack.c.b16 %v637, %v635
        %v668 = vpack.c.b16 %v638, %v636
        %v669 = vpack.c.b16 %v641, %v639
        %v670 = vpack.c.b16 %v642, %v640
        %v671 = vpack.c.b16 %v645, %v643
        %v672 = vpack.c.b16 %v646, %v644
        %v673 = vpack.c.b16 %v649, %v647
        %v674 = vpack.c.b16 %v650, %v648
        %v675 = vpack.c.b16 %v653, %v651
        %v676 = vpack.c.b16 %v654, %v652
        %v677 = vpack.c.b16 %v657, %v655
        %v678 = vpack.c.b16 %v658, %v656
        %v679 = vpack.c.b16 %v661, %v659
        %v680 = vpack.c.b16 %v662, %v660
        %v681 = vpack.c.b16 %v665, %v663
        %v682 = vpack.c.b16 %v666, %v664
        %699 = vmatprep.subr.bf16.mxu0 %v682
        %700 = vmatpush1.bf16.msra.mxu0 %v681
        %701 = vmatprep.subr.bf16.mxu0 %v680
        %702 = vmatpush1.bf16.msra.mxu0 %v679
        %703 = vmatprep.subr.bf16.mxu0 %v678
        %704 = vmatpush1.bf16.msra.mxu0 %v677
        %705 = vmatprep.subr.bf16.mxu0 %v676
        %706 = vmatpush1.bf16.msra.mxu0 %v675
        %707 = vmatprep.subr.bf16.mxu0 %v674
        %708 = vmatpush1.bf16.msra.mxu0 %v673
        %709 = vmatprep.subr.bf16.mxu0 %v672
        %710 = vmatpush1.bf16.msra.mxu0 %v671
        %711 = vmatprep.subr.bf16.mxu0 %v670
        %712 = vmatpush1.bf16.msra.mxu0 %v669
        %713 = vmatprep.subr.bf16.mxu0 %v668
        %714 = vmatpush1.bf16.msra.mxu0 %v667
        %715 = vmatprep.subr.bf16.mxu0 0
        %716 = vmatpush2.bf16.msra.mxu0 0
        %717 = vmatprep.subr.bf16.mxu0 0
        %718 = vmatpush2.bf16.msra.mxu0 0
        %719 = vmatprep.subr.bf16.mxu0 0
        %720 = vmatpush2.bf16.msra.mxu0 0
        %721 = vmatprep.subr.bf16.mxu0 0
        %722 = vmatpush2.bf16.msra.mxu0 0
        %723 = vmatprep.subr.bf16.mxu0 0
        %724 = vmatpush2.bf16.msra.mxu0 0
        %725 = vmatprep.subr.bf16.mxu0 0
        %726 = vmatpush2.bf16.msra.mxu0 0
        %727 = vmatprep.subr.bf16.mxu0 0
        %728 = vmatpush2.bf16.msra.mxu0 0
        %729 = vmatprep.subr.bf16.mxu0 0
        %730 = vmatpush2.bf16.msra.mxu0 0
        %731 = vmatprep.mubr.bf16.mxu0 0
        %732 = vmatmul.mubr.bf16.gmra.mxu0 %v590
        %v733 = vpop.f32.mrf.mxu0
        %v734 = vadd.f32 %v612, %v733
        %v735 = vpop.f32.mrf.mxu0
        %v736 = vadd.f32 %v616, %v735
        %v737 = vpop.f32.mrf.mxu0
        %v738 = vpop.f32.mrf.mxu0
        %739 = vdwg.mxu0
        %v740 = vxor.u32 %v734, 2147483648
        %v741 = vmul.f32 %v740, 1.442695
        %v742 = vpow.pop %v741
        %v743 = vadd.f32 %v742, 1.0
        %v744 = vrcp.pop %v743
        %v745 = vmul.f32 1.0, %v744
        %v746 = vmax.f32 %v736, 0.0
        %v747 = vsub.f32 %v746, %v585
        %v748 = vmul.f32 %v745, %v747
        %v749 = vadd.f32 %v748, %v585
        %v750 = vpack.c.bf16 %v749, %v749
        %v751 = vld [vmem:[#allocation8] sm:$0xff]
        %v752 = vld [vmem:[#allocation8 + $0x8] sm:$0xff]
        %v753 = vld [vmem:[#allocation8 + $0x10] sm:$0xff]
        %v754 = vld [vmem:[#allocation8 + $0x18] sm:$0xff]
        %v755 = vld [vmem:[#allocation8 + $0x20] sm:$0xff]
        %v756 = vld [vmem:[#allocation8 + $0x28] sm:$0xff]
        %v757 = vld [vmem:[#allocation8 + $0x30] sm:$0xff]
        %v758 = vld [vmem:[#allocation8 + $0x38] sm:$0xff]
        %v759 = vld [vmem:[#allocation8 + $0x40] sm:$0xff]
        %v760 = vld [vmem:[#allocation8 + $0x48] sm:$0xff]
        %v761 = vld [vmem:[#allocation8 + $0x50] sm:$0xff]
        %v762 = vld [vmem:[#allocation8 + $0x58] sm:$0xff]
        %v763 = vld [vmem:[#allocation8 + $0x60] sm:$0xff]
        %v764 = vld [vmem:[#allocation8 + $0x68] sm:$0xff]
        %v765 = vld [vmem:[#allocation8 + $0x70] sm:$0xff]
        %v766 = vld [vmem:[#allocation8 + $0x78] sm:$0xff]
        %v767 = vld [vmem:[%s5] sm:$0x3]
        %v769 = vlaneseq
        %v770 = vshrl.u32 %v769, 7
        %v771 = vsub.s32 0, %v770
        %v772 = vrot.slane %v767, %v771
        %v773 = vlaneseq
        %v774 = vshrl.u32 %v773, 7
        %v775 = vsub.s32 1, %v774
        %v776 = vrot.slane %v767, %v775
        %v795 = vunpack.c.l.b16 %v751
        %v796 = vunpack.c.h.b16 %v751
        %v797 = vunpack.c.l.b16 %v752
        %v798 = vunpack.c.h.b16 %v752
        %v799 = vunpack.c.l.b16 %v753
        %v800 = vunpack.c.h.b16 %v753
        %v801 = vunpack.c.l.b16 %v754
        %v802 = vunpack.c.h.b16 %v754
        %v803 = vunpack.c.l.b16 %v755
        %v804 = vunpack.c.h.b16 %v755
        %v805 = vunpack.c.l.b16 %v756
        %v806 = vunpack.c.h.b16 %v756
        %v807 = vunpack.c.l.b16 %v757
        %v808 = vunpack.c.h.b16 %v757
        %v809 = vunpack.c.l.b16 %v758
        %v810 = vunpack.c.h.b16 %v758
        %v811 = vunpack.c.l.b16 %v759
        %v812 = vunpack.c.h.b16 %v759
        %v813 = vunpack.c.l.b16 %v760
        %v814 = vunpack.c.h.b16 %v760
        %v815 = vunpack.c.l.b16 %v761
        %v816 = vunpack.c.h.b16 %v761
        %v817 = vunpack.c.l.b16 %v762
        %v818 = vunpack.c.h.b16 %v762
        %v819 = vunpack.c.l.b16 %v763
        %v820 = vunpack.c.h.b16 %v763
        %v821 = vunpack.c.l.b16 %v764
        %v822 = vunpack.c.h.b16 %v764
        %v823 = vunpack.c.l.b16 %v765
        %v824 = vunpack.c.h.b16 %v765
        %v825 = vunpack.c.l.b16 %v766
        %v826 = vunpack.c.h.b16 %v766
        %v827 = vpack.c.b16 %v797, %v795
        %v828 = vpack.c.b16 %v798, %v796
        %v829 = vpack.c.b16 %v801, %v799
        %v830 = vpack.c.b16 %v802, %v800
        %v831 = vpack.c.b16 %v805, %v803
        %v832 = vpack.c.b16 %v806, %v804
        %v833 = vpack.c.b16 %v809, %v807
        %v834 = vpack.c.b16 %v810, %v808
        %v835 = vpack.c.b16 %v813, %v811
        %v836 = vpack.c.b16 %v814, %v812
        %v837 = vpack.c.b16 %v817, %v815
        %v838 = vpack.c.b16 %v818, %v816
        %v839 = vpack.c.b16 %v821, %v819
        %v840 = vpack.c.b16 %v822, %v820
        %v841 = vpack.c.b16 %v825, %v823
        %v842 = vpack.c.b16 %v826, %v824
        %859 = vmatprep.subr.bf16.mxu0 %v842
        %860 = vmatpush1.bf16.msra.mxu0 %v841
        %861 = vmatprep.subr.bf16.mxu0 %v840
        %862 = vmatpush1.bf16.msra.mxu0 %v839
        %863 = vmatprep.subr.bf16.mxu0 %v838
        %864 = vmatpush1.bf16.msra.mxu0 %v837
        %865 = vmatprep.subr.bf16.mxu0 %v836
        %866 = vmatpush1.bf16.msra.mxu0 %v835
        %867 = vmatprep.subr.bf16.mxu0 %v834
        %868 = vmatpush1.bf16.msra.mxu0 %v833
        %869 = vmatprep.subr.bf16.mxu0 %v832
        %870 = vmatpush1.bf16.msra.mxu0 %v831
        %871 = vmatprep.subr.bf16.mxu0 %v830
        %872 = vmatpush1.bf16.msra.mxu0 %v829
        %873 = vmatprep.subr.bf16.mxu0 %v828
        %874 = vmatpush1.bf16.msra.mxu0 %v827
        %875 = vmatprep.subr.bf16.mxu0 0
        %876 = vmatpush2.bf16.msra.mxu0 0
        %877 = vmatprep.subr.bf16.mxu0 0
        %878 = vmatpush2.bf16.msra.mxu0 0
        %879 = vmatprep.subr.bf16.mxu0 0
        %880 = vmatpush2.bf16.msra.mxu0 0
        %881 = vmatprep.subr.bf16.mxu0 0
        %882 = vmatpush2.bf16.msra.mxu0 0
        %883 = vmatprep.subr.bf16.mxu0 0
        %884 = vmatpush2.bf16.msra.mxu0 0
        %885 = vmatprep.subr.bf16.mxu0 0
        %886 = vmatpush2.bf16.msra.mxu0 0
        %887 = vmatprep.subr.bf16.mxu0 0
        %888 = vmatpush2.bf16.msra.mxu0 0
        %889 = vmatprep.subr.bf16.mxu0 0
        %890 = vmatpush2.bf16.msra.mxu0 0
        %891 = vmatprep.mubr.bf16.mxu0 0
        %892 = vmatmul.mubr.bf16.gmra.mxu0 %v750
        %v893 = vpop.f32.mrf.mxu0
        %v894 = vadd.f32 %v772, %v893
        %v895 = vpop.f32.mrf.mxu0
        %v896 = vadd.f32 %v776, %v895
        %v897 = vpop.f32.mrf.mxu0
        %v898 = vpop.f32.mrf.mxu0
        %899 = vdwg.mxu0
        %v900 = vxor.u32 %v894, 2147483648
        %v901 = vmul.f32 %v900, 1.442695
        %v902 = vpow.pop %v901
        %v903 = vadd.f32 %v902, 1.0
        %v904 = vrcp.pop %v903
        %v905 = vmul.f32 1.0, %v904
        %v906 = vmax.f32 %v896, 0.0
        %v907 = vsub.f32 %v906, %v749
        %v908 = vmul.f32 %v905, %v907
        %v909 = vadd.f32 %v908, %v749
        %910 = vst [vmem:[%s311] sm:$0xff] %v909
        %s911 = sand.u32 %s164, 1
        %s912 = scalar_lea.sflag [#allocation4], %s911
        %s913 = sand.u32 %s164, 1
        %s914 = smul.addr %s913, 8
        %s915 = scalar_lea.vmem [#allocation10], %s914
        // Predicated region
        $region61: #{embedding_forward.1} parent=43 // pred_check
          %p916 = pneg %p174
        $region62: #{embedding_forward.1} parent=43 // pred_check_branch
          %918 = sbr.rel (%p916) target = $region64
        $region63: #{embedding_forward.1} parent=43 // pred_region
          %s920 = ssub.s32 128, 128
          %921 = vsyncadd %s912, %s920
          %s922 = smul.addr %s25, 128
          %s923 = scalar_lea.hbm %s6, %s922
          %s925 = sshll.u32 %s915, 4
          %s926 = int_to_ptr.vmem [resolvable:$true] %s925
          %928 = dma.vmem_to_hbm [thread:$0]  %s926, 128, %s923, %s912
        $region64: #{embedding_forward.1} parent=43 // pred_fallthru
          _
      $region44: #{embedding_forward.1} parent=5 // pred_fallthru
        _
      %p929 = scmp.le.s32.totalorder 2, %s20
      // Predicated region
      $region65: #{embedding_forward.1} parent=5 // pred_check
        %p930 = pneg %p929
      $region66: #{embedding_forward.1} parent=5 // pred_check_branch
        %932 = sbr.rel (%p930) target = $region68
      $region67: #{embedding_forward.1} parent=5 // pred_region
        %s933 = ssub.s32 %s20, 2
        // Predicated region
        $region69: #{embedding_forward.1} parent=67 // pred_check
          %p934 = pneg %p180
        $region70: #{embedding_forward.1} parent=67 // pred_check_branch
          %936 = sbr.rel (%p934) target = $region72
        $region71: #{embedding_forward.1} parent=67 // pred_region
          %s937 = sand.u32 %s165, 1
          %s938 = scalar_lea.sflag [#allocation4], %s937
          %s939 = sand.u32 %s165, 1
          %s940 = smul.addr %s939, 8
          %s941 = scalar_lea.vmem [#allocation10], %s940
          %942 = dma.done %s938, 128
        $region72: #{embedding_forward.1} parent=67 // pred_fallthru
          _
      $region68: #{embedding_forward.1} parent=5 // pred_fallthru
        _
    $region6: #{embedding_forward.1} parent=1 // loop_footer
      %s24 = sadd.s32 1, %s20
    $region7: #{embedding_forward.1} parent=1 // loop_footer_branch
      %19 = sbr.rel target = $region3
    $region8: #{embedding_forward.1} parent=1 // loop_exit
      _
    %943 = vsyncpa [#allocation3], 1
    %s944 = scalar_lea.sflag [#allocation3], 1
    %945 = vsyncpa %s944, 1
    %946 = vsyncpa [#allocation6], 1
    %947 = vsyncpa [#allocation9], 1
    %948 = vsyncpa [#allocation4], 1
    %s949 = scalar_lea.sflag [#allocation4], 1
    %950 = vsyncpa %s949, 1

</llo_original>
